<compile_context>
chip_gen: v7x
topology: tpu7x:2x2x1
jax: 0.10.0
libtpu: 0.0.40
codegen_flags: <defaults>
</compile_context>

<pallas_src>
from functools import partial

import jax
import jax.numpy as jnp
from jax.experimental import pallas as pl
from jax.experimental.pallas import tpu as pltpu


def _classifier_kernel(x_ref, w1_ref, b1_ref, w2_ref, b2_ref, out_ref, acc_ref,
                       *, inv_spatial):
    k = pl.program_id(1)                      # spatial-chunk index (reduction axis)

    @pl.when(k == 0)
    def _init():
        acc_ref[...] = jnp.zeros_like(acc_ref)

    # Cast chunk once to f32, then pure f32 add-reduce (v5e-friendly).
    acc_ref[...] += jnp.sum(x_ref[...].astype(jnp.float32), axis=-1)   # (tb, C)

    @pl.when(k == pl.num_programs(1) - 1)
    def _finalize():
        pooled = acc_ref[...] * inv_spatial                            # mean, (tb, C)
        w1 = w1_ref[...].astype(jnp.float32)
        w2 = w2_ref[...].astype(jnp.float32)
        b1 = b1_ref[...].astype(jnp.float32)
        b2 = b2_ref[...].astype(jnp.float32)
        h = jnp.dot(pooled, w1, preferred_element_type=jnp.float32) + b1
        h = jnp.maximum(h, 0.0)
        logits = jnp.dot(h, w2, preferred_element_type=jnp.float32) + b2
        out_ref[...] = logits.astype(out_ref.dtype)


def _choose_batch_block(B):
    if B <= 128:
        return B
    for tb in (128, 64, 32, 16, 8):
        if B % tb == 0:
            return tb
    return B


def _choose_spatial_chunk(S, tb, C, itemsize, budget_bytes=8 << 20):
    # Cap per-step x tile (~8 MiB) so double-buffering stays well under the
    # v7x 64 MiB VMEM budget (trivially fine on v5e/v6e 128 MiB).
    if S % 128 != 0:
        return S                                   # full extent is always legal
    max_lanes = max(128, budget_bytes // max(1, tb * C * itemsize))
    chunk = min(S, (max_lanes // 128) * 128)
    while chunk > 128 and S % chunk != 0:
        chunk -= 128
    return chunk if S % chunk == 0 else S


def classifier_forward(x_nchw, w1, b1, w2, b2, *, spatial_chunk=None,
                       batch_block=None, vmem_limit_bytes=48 << 20):
    """x_nchw: (B, C, H, W); w1: (C, hidden) [pre-transposed]; b1: (hidden,);
       w2: (hidden, num_classes) [pre-transposed]; b2: (num_classes,)"""
    B, C, H, W = x_nchw.shape
    S = H * W
    hidden = w1.shape[1]
    num_classes = w2.shape[1]

    # No dtype upcast: keep x / weights in their native dtypes for DMA.
    x_flat = x_nchw.reshape(B, C, S)
    b1_2d = b1.reshape(1, hidden)
    b2_2d = b2.reshape(1, num_classes)

    tb = batch_block if batch_block is not None else _choose_batch_block(B)
    assert B % tb == 0, "batch block must divide batch"
    ts = spatial_chunk if spatial_chunk is not None else _choose_spatial_chunk(
        S, tb, C, jnp.dtype(x_flat.dtype).itemsize)
    assert S % ts == 0 and (ts == S or ts % 128 == 0), "bad spatial chunk"

    grid = (B // tb, S // ts)
    kernel = partial(_classifier_kernel, inv_spatial=float(1.0 / S))

    x_bytes = x_flat.size * jnp.dtype(x_flat.dtype).itemsize
    w_bytes = sum(a.size * jnp.dtype(a.dtype).itemsize for a in (w1, b1, w2, b2))
    out_bytes = B * num_classes * jnp.dtype(x_nchw.dtype).itemsize
    cost = pl.CostEstimate(
        flops=2 * B * (C * hidden + hidden * num_classes),
        transcendentals=0,
        bytes_accessed=x_bytes + w_bytes + out_bytes)

    return pl.pallas_call(
        kernel,
        out_shape=jax.ShapeDtypeStruct((B, num_classes), x_nchw.dtype),
        grid_spec=pltpu.PrefetchScalarGridSpec(
            num_scalar_prefetch=0,
            grid=grid,
            in_specs=[
                # dominant input: tiled over batch and spatial chunks
                pl.BlockSpec((tb, C, ts), lambda i, k: (i, 0, k)),
                # weights/biases: constant block index -> DMA'd once, resident
                pl.BlockSpec((C, hidden), lambda i, k: (0, 0)),
                pl.BlockSpec((1, hidden), lambda i, k: (0, 0)),
                pl.BlockSpec((hidden, num_classes), lambda i, k: (0, 0)),
                pl.BlockSpec((1, num_classes), lambda i, k: (0, 0)),
            ],
            out_specs=pl.BlockSpec((tb, num_classes), lambda i, k: (i, 0)),
            scratch_shapes=[pltpu.VMEM((tb, C), jnp.float32)],
        ),
        compiler_params=pltpu.CompilerParams(
            dimension_semantics=("parallel", "arbitrary"),
            vmem_limit_bytes=vmem_limit_bytes),
        cost_estimate=cost,
    )(x_flat, w1, b1_2d, w2, b2_2d)


if __name__ == "__main__":
    # Module hyper-params (small, consistent with the forward pass)
    hidden_size = 32
    num_classes = 10
    B, C, H, W = 2, hidden_size * 2, 16, 16   # input channels must be hidden_size*2

    key = jax.random.PRNGKey(0)
    kx, kw1, kb1, kw2, kb2 = jax.random.split(key, 5)

    x = jax.random.normal(kx, (B, C, H, W), dtype=jnp.float32)

    # Deterministic parameter init (PyTorch-Linear-style uniform bounds),
    # stored pre-transposed as (in_features, out_features).
    lim1 = 1.0 / jnp.sqrt(jnp.float32(C))
    lim2 = 1.0 / jnp.sqrt(jnp.float32(hidden_size))
    w1 = jax.random.uniform(kw1, (C, hidden_size), minval=-lim1, maxval=lim1, dtype=jnp.float32)
    b1 = jax.random.uniform(kb1, (hidden_size,), minval=-lim1, maxval=lim1, dtype=jnp.float32)
    w2 = jax.random.uniform(kw2, (hidden_size, num_classes), minval=-lim2, maxval=lim2, dtype=jnp.float32)
    b2 = jax.random.uniform(kb2, (num_classes,), minval=-lim2, maxval=lim2, dtype=jnp.float32)

    # Force a 2-chunk spatial grid (128 lanes each) so the accumulate/finalize
    # reduction path is actually exercised at this small test size.
    out = classifier_forward(x, w1, b1, w2, b2, spatial_chunk=128)
    out = jax.block_until_ready(out)

    # Pure-JAX reference check
    pooled_ref = jnp.mean(x.reshape(B, C, -1), axis=-1)
    h_ref = jnp.maximum(pooled_ref @ w1 + b1, 0.0)
    ref = h_ref @ w2 + b2
    assert out.shape == (B, num_classes)
    assert jnp.allclose(out, ref, atol=1e-5, rtol=1e-5)

    print("KERNEL_OK")
</pallas_src>

<mosaic_0001>
module attributes {stable_mosaic.version = 11 : i64} {
  func.func @_classifier_kernel(%arg0: i32, %arg1: i32, %arg2: memref<2x64x128xf32, #tpu.memory_space<vmem>>, %arg3: memref<64x32xf32, #tpu.memory_space<vmem>>, %arg4: memref<1x32xf32, #tpu.memory_space<vmem>>, %arg5: memref<32x10xf32, #tpu.memory_space<vmem>>, %arg6: memref<1x10xf32, #tpu.memory_space<vmem>>, %arg7: memref<2x10xf32, #tpu.memory_space<vmem>>, %arg8: memref<2x64xf32, #tpu.memory_space<vmem>>) attributes {dimension_semantics = [#tpu.dimension_semantics<parallel>, #tpu.dimension_semantics<arbitrary>], iteration_bounds = array<i64: 1, 2>, scalar_prefetch = 0 : i64, scratch_operands = 1 : i64, tpu.core_type = #tpu.core_type<tc>, window_params = [{transform_indices = @transform_0, window_bounds = array<i64: 2, 64, 128>}, {pipeline_mode = #tpu.pipeline_mode<synchronous>, transform_indices = @transform_1, window_bounds = array<i64: 64, 32>}, {pipeline_mode = #tpu.pipeline_mode<synchronous>, transform_indices = @transform_2, window_bounds = array<i64: 1, 32>}, {pipeline_mode = #tpu.pipeline_mode<synchronous>, transform_indices = @transform_3, window_bounds = array<i64: 32, 10>}, {pipeline_mode = #tpu.pipeline_mode<synchronous>, transform_indices = @transform_4, window_bounds = array<i64: 1, 10>}, {transform_indices = @transform_5, window_bounds = array<i64: 2, 10>}]} {
    %c0_i32 = arith.constant 0 : i32
    %0 = arith.cmpi eq, %arg1, %c0_i32 : i32
    %1 = arith.extui %0 : i1 to i32
    %c0_i32_0 = arith.constant 0 : i32
    %2 = arith.cmpi ne, %1, %c0_i32_0 : i32
    scf.if %2 {
      %cst_8 = arith.constant 0.000000e+00 : f32
      %11 = vector.broadcast %cst_8 : f32 to vector<2x64xf32>
      %c0_9 = arith.constant 0 : index
      %c0_10 = arith.constant 0 : index
      %12 = vector.load %arg8[%c0_9, %c0_10] : memref<2x64xf32, #tpu.memory_space<vmem>>, vector<2x64xf32>
      tpu.vector_store %arg8[%c0_9, %c0_10], %11 {strides = array<i32>} : memref<2x64xf32, #tpu.memory_space<vmem>>, vector<2x64xf32>,
    } else {
    }
    %c0 = arith.constant 0 : index
    %c0_1 = arith.constant 0 : index
    %3 = vector.load %arg8[%c0, %c0_1] : memref<2x64xf32, #tpu.memory_space<vmem>>, vector<2x64xf32>
    %c0_2 = arith.constant 0 : index
    %c0_3 = arith.constant 0 : index
    %c0_4 = arith.constant 0 : index
    %4 = vector.load %arg2[%c0_2, %c0_3, %c0_4] : memref<2x64x128xf32, #tpu.memory_space<vmem>>, vector<2x64x128xf32>
    %cst = arith.constant dense<0.000000e+00> : vector<2x64xf32>
    %5 = vector.multi_reduction <add>, %4, %cst [2] : vector<2x64x128xf32> to vector<2x64xf32>
    %6 = arith.addf %3, %5 : vector<2x64xf32>
    %c0_5 = arith.constant 0 : index
    %c0_6 = arith.constant 0 : index
    %7 = vector.load %arg8[%c0_5, %c0_6] : memref<2x64xf32, #tpu.memory_space<vmem>>, vector<2x64xf32>
    tpu.vector_store %arg8[%c0_5, %c0_6], %6 {strides = array<i32>} : memref<2x64xf32, #tpu.memory_space<vmem>>, vector<2x64xf32>,
    %c1_i32 = arith.constant 1 : i32
    %8 = arith.cmpi eq, %arg1, %c1_i32 : i32
    %9 = arith.extui %8 : i1 to i32
    %c0_i32_7 = arith.constant 0 : i32
    %10 = arith.cmpi ne, %9, %c0_i32_7 : i32
    scf.if %10 {
      %c0_8 = arith.constant 0 : index
      %c0_9 = arith.constant 0 : index
      %11 = vector.load %arg8[%c0_8, %c0_9] : memref<2x64xf32, #tpu.memory_space<vmem>>, vector<2x64xf32>
      %cst_10 = arith.constant 3.906250e-03 : f32
      %12 = vector.broadcast %cst_10 : f32 to vector<2x64xf32>
      %13 = arith.mulf %11, %12 : vector<2x64xf32>
      %c0_11 = arith.constant 0 : index
      %c0_12 = arith.constant 0 : index
      %14 = vector.load %arg3[%c0_11, %c0_12] : memref<64x32xf32, #tpu.memory_space<vmem>>, vector<64x32xf32>
      %c0_13 = arith.constant 0 : index
      %c0_14 = arith.constant 0 : index
      %15 = vector.load %arg5[%c0_13, %c0_14] : memref<32x10xf32, #tpu.memory_space<vmem>>, vector<32x10xf32>
      %c0_15 = arith.constant 0 : index
      %c0_16 = arith.constant 0 : index
      %16 = vector.load %arg4[%c0_15, %c0_16] : memref<1x32xf32, #tpu.memory_space<vmem>>, vector<1x32xf32>
      %c0_17 = arith.constant 0 : index
      %c0_18 = arith.constant 0 : index
      %17 = vector.load %arg6[%c0_17, %c0_18] : memref<1x10xf32, #tpu.memory_space<vmem>>, vector<1x10xf32>
      %cst_19 = arith.constant dense<0.000000e+00> : vector<2x32xf32>
      %18 = tpu.matmul %13, %14, %cst_19 {dimension_numbers = #tpu.dot_dimension_numbers<[1], [0], [0], [1], [0, 0, 1, 1], [], []>} : vector<2x64xf32>, vector<64x32xf32>, vector<2x32xf32> -> vector<2x32xf32>
      %19 = vector.broadcast %16 : vector<1x32xf32> to vector<2x32xf32>
      %20 = arith.addf %18, %19 : vector<2x32xf32>
      %cst_20 = arith.constant 0.000000e+00 : f32
      %21 = vector.broadcast %cst_20 : f32 to vector<2x32xf32>
      %22 = arith.maximumf %20, %21 : vector<2x32xf32>
      %cst_21 = arith.constant dense<0.000000e+00> : vector<2x10xf32>
      %23 = tpu.matmul %22, %15, %cst_21 {dimension_numbers = #tpu.dot_dimension_numbers<[1], [0], [0], [1], [0, 0, 1, 1], [], []>} : vector<2x32xf32>, vector<32x10xf32>, vector<2x10xf32> -> vector<2x10xf32>
      %24 = vector.broadcast %17 : vector<1x10xf32> to vector<2x10xf32>
      %25 = arith.addf %23, %24 : vector<2x10xf32>
      %c0_22 = arith.constant 0 : index
      %c0_23 = arith.constant 0 : index
      %26 = vector.load %arg7[%c0_22, %c0_23] : memref<2x10xf32, #tpu.memory_space<vmem>>, vector<2x10xf32>
      tpu.vector_store %arg7[%c0_22, %c0_23], %25 {strides = array<i32>} : memref<2x10xf32, #tpu.memory_space<vmem>>, vector<2x10xf32>,
    } else {
    }
    return
  }
  func.func @transform_0(%arg0: i32, %arg1: i32) -> (i32, i32, i32) {
    %c0_i32 = arith.constant 0 : i32
    %c0_i32_0 = arith.constant 0 : i32
    return %arg0, %c0_i32, %arg1 : i32, i32, i32
  }
  func.func @transform_1(%arg0: i32, %arg1: i32) -> (i32, i32) {
    %c0_i32 = arith.constant 0 : i32
    %c0_i32_0 = arith.constant 0 : i32
    %c0_i32_1 = arith.constant 0 : i32
    return %c0_i32, %c0_i32_0 : i32, i32
  }
  func.func @transform_2(%arg0: i32, %arg1: i32) -> (i32, i32) {
    %c0_i32 = arith.constant 0 : i32
    %c0_i32_0 = arith.constant 0 : i32
    %c0_i32_1 = arith.constant 0 : i32
    return %c0_i32, %c0_i32_0 : i32, i32
  }
  func.func @transform_3(%arg0: i32, %arg1: i32) -> (i32, i32) {
    %c0_i32 = arith.constant 0 : i32
    %c0_i32_0 = arith.constant 0 : i32
    %c0_i32_1 = arith.constant 0 : i32
    return %c0_i32, %c0_i32_0 : i32, i32
  }
  func.func @transform_4(%arg0: i32, %arg1: i32) -> (i32, i32) {
    %c0_i32 = arith.constant 0 : i32
    %c0_i32_0 = arith.constant 0 : i32
    %c0_i32_1 = arith.constant 0 : i32
    return %c0_i32, %c0_i32_0 : i32, i32
  }
  func.func @transform_5(%arg0: i32, %arg1: i32) -> (i32, i32) {
    %c0_i32 = arith.constant 0 : i32
    %c0_i32_0 = arith.constant 0 : i32
    return %arg0, %c0_i32 : i32, i32
  }
}

</mosaic_0001>

<llo_original>
// kernel: tpu_custom_call.1
$region0: #{tpu_custom_call.1}
  #allocation0 [shape = 'u32[]', space=smem, size = 0x4, offset = 0x4, fixed_abs, tag = 'smem constant byte address 0x4 - core index']
  #allocation1 [shape = 'u32[144,128]{1,0:T(1,128)}', space=vmem, size = 0x12000, scoped, tag = 'internal scratch']
  #allocation2 [shape = 'f32[2,64]{1,0:T(2,128)}', space=vmem, size = 0x400, scoped, tag = 'scratch operand']
  %s0 = inlined_call_operand.hbm [shape: f32[2,64,256], index: 0, kind: input, shape index: {}]
  %s1 = inlined_call_operand.vmem [shape: f32[64,32], index: 1, kind: input, shape index: {}]
  %s2 = inlined_call_operand.vmem [shape: f32[1,32], index: 2, kind: input, shape index: {}]
  %s3 = inlined_call_operand.vmem [shape: f32[32,10], index: 3, kind: input, shape index: {}]
  %s4 = inlined_call_operand.vmem [shape: f32[1,10], index: 4, kind: input, shape index: {}]
  %s5 = inlined_call_operand.hbm [shape: f32[2,10], index: 5, kind: output, shape index: {}]
  %s6 = sld [smem:[#allocation0]]
  $region65: #{tpu_custom_call.1} parent=0
    _
  %s8 = ssub.s32 1, %s6
  %s9 = scalar_select 0, %s8, %s6
  $region1: #{tpu_custom_call.1} parent=0
    #allocation3 [shape = 'u8[131072]{0}', space=vmem, size = 0x20000, scoped, tag = 'input window, operand 0']
    #allocation4 [shape = 's32[2]{0}', space=sflag, size = 0x8, scoped, tag = 'scoped memory for tpu_custom_call.1']
    #allocation5 [shape = 's32[2]{0}', space=sflag, size = 0x8, scoped, tag = 'scoped memory for tpu_custom_call.1']
    #allocation6 [shape = 'u8[1024]{0}', space=vmem, size = 0x400, scoped, tag = 'output window, operand 0, single buffered']
    %10 = vsyncpa [#allocation4], 0
    %s11 = scalar_lea.sflag [#allocation4], 1
    %12 = vsyncpa %s11, 0
    %13 = vsyncpa [#allocation5], 0
    loop: start=0, step=1, limit=4
    $region2: #{tpu_custom_call.1} parent=1 // loop_pre_header
      _
    $region3: #{tpu_custom_call.1} parent=1 // loop_header
      %s15 = sphi 0, %s19
      %p16 = scmp.ge.s32.totalorder %s15, 4
      %s22 = sphi 0, %s34
      %s23 = sphi 0, %s30
      %s24 = sphi 0, %s22
      %s25 = sphi 0, %s23
      %s26 = sphi 0, %s24
      %s27 = sphi 0, %s25
      %s39 = sphi 0, %s41
      %s42 = sphi 0, %s39
      %s43 = sphi 0, %s42
      %s59 = sphi 0, %s43
      %s63 = sphi 0, %s63
      %s65 = sphi 0, %s63
      %s66 = sphi 0, %s65
      %s80 = sphi 0, %s66
      %s84 = sphi 0, %s84
      %s86 = sphi 0, %s84
      %s87 = sphi 0, %s86
      %s101 = sphi 0, %s87
      %s105 = sphi 0, %s105
      %s107 = sphi 0, %s105
      %s108 = sphi 0, %s107
      %s122 = sphi 0, %s108
      %s126 = sphi 0, %s126
      %s128 = sphi 0, %s126
      %s129 = sphi 0, %s128
      %s143 = sphi 0, %s129
      %s149 = sphi 0, %s151
      %s152 = sphi 0, %s149
      %s153 = sphi 0, %s152
      %s169 = sphi 0, %s153
    $region4: #{tpu_custom_call.1} parent=1 // loop_header_branch
      %18 = sbr.rel (%p16) target = $region8
    $region5: #{tpu_custom_call.1} parent=1 // loop_body
      %s20 = ssub.s32 %s15, 1
      %s21 = ssub.s32 %s15, 2
      %s28 = sadd.s32 1, %s23
      %p29 = scmp.ge.s32.totalorder %s28, 2
      %s30 = scalar_select %p29, 0, %s28
      %s31 = sadd.s32 1, %s22
      %s32 = scalar_select %p29, %s31, %s22
      %p33 = scmp.ge.s32.totalorder %s32, 1
      %s34 = scalar_select %p33, 0, %s32
      %s35 = ssub.s32 %s22, %s34
      %s36 = ssub.s32 %s23, %s30
      %s37 = sor.u32 %s35, %s36
      %p38 = scmp.eq.s32.totalorder %s37, 0
      %s40 = sadd.s32 %s39, 1
      %s41 = scalar_select %p38, %s39, %s40
      %p44 = pneg %p38
      %p45 = scmp.eq.s32.totalorder %s15, 1
      %p46 = por %p44, %p45
      %p47 = scmp.ne.s32.totalorder %s39, %s42
      %p48 = scmp.eq.s32.totalorder %s15, 0
      %p49 = por %p47, %p48
      %p50 = scmp.ne.s32.totalorder %s39, %s42
      %p51 = scmp.eq.s32.totalorder %s20, 1
      %p52 = por %p50, %p51
      %p53 = scmp.ne.s32.totalorder %s42, %s43
      %p54 = scmp.eq.s32.totalorder %s20, 0
      %p55 = por %p53, %p54
      %p56 = scmp.ne.s32.totalorder %s42, %s43
      %p57 = scmp.eq.s32.totalorder %s21, 1
      %p58 = por %p56, %p57
      %p60 = scmp.ne.s32.totalorder %s43, %s59
      %p61 = scmp.eq.s32.totalorder %s21, 0
      %p62 = por %p60, %p61
      %s64 = sadd.s32 %s63, 1
      %p67 = scmp.eq.s32.totalorder %s15, 1
      %p68 = scmp.ne.s32.totalorder %s63, %s65
      %p69 = scmp.eq.s32.totalorder %s15, 0
      %p70 = por %p68, %p69
      %p71 = scmp.ne.s32.totalorder %s63, %s65
      %p72 = scmp.eq.s32.totalorder %s20, 1
      %p73 = por %p71, %p72
      %p74 = scmp.ne.s32.totalorder %s65, %s66
      %p75 = scmp.eq.s32.totalorder %s20, 0
      %p76 = por %p74, %p75
      %p77 = scmp.ne.s32.totalorder %s65, %s66
      %p78 = scmp.eq.s32.totalorder %s21, 1
      %p79 = por %p77, %p78
      %p81 = scmp.ne.s32.totalorder %s66, %s80
      %p82 = scmp.eq.s32.totalorder %s21, 0
      %p83 = por %p81, %p82
      %s85 = sadd.s32 %s84, 1
      %p88 = scmp.eq.s32.totalorder %s15, 1
      %p89 = scmp.ne.s32.totalorder %s84, %s86
      %p90 = scmp.eq.s32.totalorder %s15, 0
      %p91 = por %p89, %p90
      %p92 = scmp.ne.s32.totalorder %s84, %s86
      %p93 = scmp.eq.s32.totalorder %s20, 1
      %p94 = por %p92, %p93
      %p95 = scmp.ne.s32.totalorder %s86, %s87
      %p96 = scmp.eq.s32.totalorder %s20, 0
      %p97 = por %p95, %p96
      %p98 = scmp.ne.s32.totalorder %s86, %s87
      %p99 = scmp.eq.s32.totalorder %s21, 1
      %p100 = por %p98, %p99
      %p102 = scmp.ne.s32.totalorder %s87, %s101
      %p103 = scmp.eq.s32.totalorder %s21, 0
      %p104 = por %p102, %p103
      %s106 = sadd.s32 %s105, 1
      %p109 = scmp.eq.s32.totalorder %s15, 1
      %p110 = scmp.ne.s32.totalorder %s105, %s107
      %p111 = scmp.eq.s32.totalorder %s15, 0
      %p112 = por %p110, %p111
      %p113 = scmp.ne.s32.totalorder %s105, %s107
      %p114 = scmp.eq.s32.totalorder %s20, 1
      %p115 = por %p113, %p114
      %p116 = scmp.ne.s32.totalorder %s107, %s108
      %p117 = scmp.eq.s32.totalorder %s20, 0
      %p118 = por %p116, %p117
      %p119 = scmp.ne.s32.totalorder %s107, %s108
      %p120 = scmp.eq.s32.totalorder %s21, 1
      %p121 = por %p119, %p120
      %p123 = scmp.ne.s32.totalorder %s108, %s122
      %p124 = scmp.eq.s32.totalorder %s21, 0
      %p125 = por %p123, %p124
      %s127 = sadd.s32 %s126, 1
      %p130 = scmp.eq.s32.totalorder %s15, 1
      %p131 = scmp.ne.s32.totalorder %s126, %s128
      %p132 = scmp.eq.s32.totalorder %s15, 0
      %p133 = por %p131, %p132
      %p134 = scmp.ne.s32.totalorder %s126, %s128
      %p135 = scmp.eq.s32.totalorder %s20, 1
      %p136 = por %p134, %p135
      %p137 = scmp.ne.s32.totalorder %s128, %s129
      %p138 = scmp.eq.s32.totalorder %s20, 0
      %p139 = por %p137, %p138
      %p140 = scmp.ne.s32.totalorder %s128, %s129
      %p141 = scmp.eq.s32.totalorder %s21, 1
      %p142 = por %p140, %p141
      %p144 = scmp.ne.s32.totalorder %s129, %s143
      %p145 = scmp.eq.s32.totalorder %s21, 0
      %p146 = por %p144, %p145
      %s147 = ssub.s32 %s22, %s34
      %p148 = scmp.eq.s32.totalorder %s147, 0
      %s150 = sadd.s32 %s149, 1
      %s151 = scalar_select %p148, %s149, %s150
      %p154 = pneg %p148
      %p155 = scmp.eq.s32.totalorder %s15, 1
      %p156 = por %p154, %p155
      %p157 = scmp.ne.s32.totalorder %s149, %s152
      %p158 = scmp.eq.s32.totalorder %s15, 0
      %p159 = por %p157, %p158
      %p160 = scmp.ne.s32.totalorder %s149, %s152
      %p161 = scmp.eq.s32.totalorder %s20, 1
      %p162 = por %p160, %p161
      %p163 = scmp.ne.s32.totalorder %s152, %s153
      %p164 = scmp.eq.s32.totalorder %s20, 0
      %p165 = por %p163, %p164
      %p166 = scmp.ne.s32.totalorder %s152, %s153
      %p167 = scmp.eq.s32.totalorder %s21, 1
      %p168 = por %p166, %p167
      %p170 = scmp.ne.s32.totalorder %s153, %s169
      %p171 = scmp.eq.s32.totalorder %s21, 0
      %p172 = por %p170, %p171
      %p173 = scmp.le.s32.totalorder 1, %s15
      %p174 = scmp.lt.s32.totalorder %s15, 3
      %p175 = pnand %p173, %p174
      %p176 = pneg %p175
      // Predicated region
      $region9: #{tpu_custom_call.1} parent=5 // pred_check
        _
      $region10: #{tpu_custom_call.1} parent=5 // pred_check_branch
        %178 = sbr.rel (%p175) target = $region12
      $region11: #{tpu_custom_call.1} parent=5 // pred_region
        %s179 = ssub.s32 %s15, 1
        // Predicated region
        $region13: #{tpu_custom_call.1} parent=11 // pred_check
          %p180 = pneg %p76
        $region14: #{tpu_custom_call.1} parent=11 // pred_check_branch
          %182 = sbr.rel (%p180) target = $region16
        $region15: #{tpu_custom_call.1} parent=11 // pred_region
          _
        $region16: #{tpu_custom_call.1} parent=11 // pred_fallthru
          _
        // Predicated region
        $region17: #{tpu_custom_call.1} parent=11 // pred_check
          %p183 = pneg %p97
        $region18: #{tpu_custom_call.1} parent=11 // pred_check_branch
          %185 = sbr.rel (%p183) target = $region20
        $region19: #{tpu_custom_call.1} parent=11 // pred_region
          _
        $region20: #{tpu_custom_call.1} parent=11 // pred_fallthru
          _
        // Predicated region
        $region21: #{tpu_custom_call.1} parent=11 // pred_check
          %p186 = pneg %p118
        $region22: #{tpu_custom_call.1} parent=11 // pred_check_branch
          %188 = sbr.rel (%p186) target = $region24
        $region23: #{tpu_custom_call.1} parent=11 // pred_region
          _
        $region24: #{tpu_custom_call.1} parent=11 // pred_fallthru
          _
        // Predicated region
        $region25: #{tpu_custom_call.1} parent=11 // pred_check
          %p189 = pneg %p139
        $region26: #{tpu_custom_call.1} parent=11 // pred_check_branch
          %191 = sbr.rel (%p189) target = $region28
        $region27: #{tpu_custom_call.1} parent=11 // pred_region
          _
        $region28: #{tpu_custom_call.1} parent=11 // pred_fallthru
          _
      $region12: #{tpu_custom_call.1} parent=5 // pred_fallthru
        _
      %p192 = scmp.lt.s32.totalorder %s15, 2
      // Predicated region
      $region29: #{tpu_custom_call.1} parent=5 // pred_check
        %p193 = pneg %p192
      $region30: #{tpu_custom_call.1} parent=5 // pred_check_branch
        %195 = sbr.rel (%p193) target = $region32
      $region31: #{tpu_custom_call.1} parent=5 // pred_region
        // Predicated region
        $region33: #{tpu_custom_call.1} parent=31 // pred_check
          %p196 = pneg %p49
        $region34: #{tpu_custom_call.1} parent=31 // pred_check_branch
          %198 = sbr.rel (%p196) target = $region36
        $region35: #{tpu_custom_call.1} parent=31 // pred_region
          %s199 = sand.u32 %s39, 1
          %s200 = scalar_lea.sflag [#allocation4], %s199
          %s201 = sand.u32 %s39, 1
          %s202 = smul.addr %s201, 128
          %s203 = scalar_lea.vmem [#allocation3], %s202
          %s204 = smul.u32 2, %s22
          %s206 = ssub.s32 2048, 2048
          %207 = vsyncadd %s200, %s206
          %s208 = smul.addr %s204, 16
          %s209 = sadd.s32 %s23, %s208
          %s210 = smul.addr %s209, 128
          %s211 = scalar_lea.hbm %s0, %s210
          %s212 = sshll.u32 %s203, 4
          %s213 = int_to_ptr.vmem [resolvable:$true] %s212
          %218 = dma.hbm_to_vmem [thread:$0]  %s211, 2048, %s213, %s200, 256, 128, 8
        $region36: #{tpu_custom_call.1} parent=31 // pred_fallthru
          _
      $region32: #{tpu_custom_call.1} parent=5 // pred_fallthru
        _
      %p219 = scmp.le.s32.totalorder 1, %s15
      %p220 = scmp.lt.s32.totalorder %s15, 3
      %p221 = pnand %p219, %p220
      %p222 = pneg %p221
      // Predicated region
      $region37: #{tpu_custom_call.1} parent=5 // pred_check
        _
      $region38: #{tpu_custom_call.1} parent=5 // pred_check_branch
        %224 = sbr.rel (%p221) target = $region40
      $region39: #{tpu_custom_call.1} parent=5 // pred_region
        %s225 = ssub.s32 %s15, 1
        %s226 = sand.u32 %s42, 1
        %s227 = scalar_lea.sflag [#allocation4], %s226
        %s228 = sand.u32 %s42, 1
        %s229 = smul.addr %s228, 128
        %s230 = scalar_lea.vmem [#allocation3], %s229
        // Predicated region
        $region41: #{tpu_custom_call.1} parent=39 // pred_check
          %p231 = pneg %p55
        $region42: #{tpu_custom_call.1} parent=39 // pred_check_branch
          %233 = sbr.rel (%p231) target = $region44
        $region43: #{tpu_custom_call.1} parent=39 // pred_region
          %234 = dma.done %s227, 2048
        $region44: #{tpu_custom_call.1} parent=39 // pred_fallthru
          _
        %s235 = sand.u32 %s42, 1
        %s236 = scalar_lea.sflag [#allocation4], %s235
        %s237 = sand.u32 %s42, 1
        %s238 = smul.addr %s237, 128
        %s239 = scalar_lea.vmem [#allocation3], %s238
        %p240 = pneg %p55
        %p241 = pneg %p52
        %p242 = pneg %p76
        %p243 = pneg %p73
        %p244 = pneg %p97
        %p245 = pneg %p94
        %p246 = pneg %p118
        %p247 = pneg %p115
        %p248 = pneg %p139
        %p249 = pneg %p136
        %p250 = pneg %p165
        %p251 = pneg %p162
        %s252 = smul.u32 2, %s24
        %p253 = scmp.eq.s32.totalorder %s25, 0
        // Predicated region
        $region45: #{tpu_custom_call.1} parent=39 // pred_check
          %p254 = pneg %p253
        $region46: #{tpu_custom_call.1} parent=39 // pred_check_branch
          %256 = sbr.rel (%p254) target = $region48
        $region47: #{tpu_custom_call.1} parent=39 // pred_region
          %vm257 = vcmask 517120
          %258 = vst.msk [vmem:[#allocation2] sm:$0x3] %vm257, 0.0
        $region48: #{tpu_custom_call.1} parent=39 // pred_fallthru
          _
        %v259 = vld [vmem:[#allocation2] sm:$0x3]
        %v260 = vld [vmem:[%s230] sm:$0xff]
        %v261 = vld [vmem:[%s230 + $0x8] sm:$0xff]
        %v262 = vld [vmem:[%s230 + $0x10] sm:$0xff]
        %v263 = vld [vmem:[%s230 + $0x18] sm:$0xff]
        %v264 = vld [vmem:[%s230 + $0x20] sm:$0xff]
        %v265 = vld [vmem:[%s230 + $0x28] sm:$0xff]
        %v266 = vld [vmem:[%s230 + $0x30] sm:$0xff]
        %v267 = vld [vmem:[%s230 + $0x38] sm:$0xff]
        %v268 = vld [vmem:[%s230 + $0x40] sm:$0xff]
        %v269 = vld [vmem:[%s230 + $0x48] sm:$0xff]
        %v270 = vld [vmem:[%s230 + $0x50] sm:$0xff]
        %v271 = vld [vmem:[%s230 + $0x58] sm:$0xff]
        %v272 = vld [vmem:[%s230 + $0x60] sm:$0xff]
        %v273 = vld [vmem:[%s230 + $0x68] sm:$0xff]
        %v274 = vld [vmem:[%s230 + $0x70] sm:$0xff]
        %v275 = vld [vmem:[%s230 + $0x78] sm:$0xff]
        %276 = vadd.xlane.f32.xlu0 %v260
        %v277 = vpop.xlane.xlu0 %276
        %278 = vadd.xlane.f32.xlu0 %v261
        %v279 = vpop.xlane.xlu0 %278
        %280 = vadd.xlane.f32.xlu0 %v262
        %v281 = vpop.xlane.xlu0 %280
        %282 = vadd.xlane.f32.xlu0 %v263
        %v283 = vpop.xlane.xlu0 %282
        %284 = vadd.xlane.f32.xlu0 %v264
        %v285 = vpop.xlane.xlu0 %284
        %286 = vadd.xlane.f32.xlu0 %v265
        %v287 = vpop.xlane.xlu0 %286
        %288 = vadd.xlane.f32.xlu0 %v266
        %v289 = vpop.xlane.xlu0 %288
        %290 = vadd.xlane.f32.xlu0 %v267
        %v291 = vpop.xlane.xlu0 %290
        %292 = vadd.xlane.f32.xlu0 %v268
        %v293 = vpop.xlane.xlu0 %292
        %294 = vadd.xlane.f32.xlu0 %v269
        %v295 = vpop.xlane.xlu0 %294
        %296 = vadd.xlane.f32.xlu0 %v270
        %v297 = vpop.xlane.xlu0 %296
        %298 = vadd.xlane.f32.xlu0 %v271
        %v299 = vpop.xlane.xlu0 %298
        %300 = vadd.xlane.f32.xlu0 %v272
        %v301 = vpop.xlane.xlu0 %300
        %302 = vadd.xlane.f32.xlu0 %v273
        %v303 = vpop.xlane.xlu0 %302
        %304 = vadd.xlane.f32.xlu0 %v274
        %v305 = vpop.xlane.xlu0 %304
        %306 = vadd.xlane.f32.xlu0 %v275
        %v307 = vpop.xlane.xlu0 %306
        %v324 = vlaneseq
        %v325 = vand.u32 %v324, 127
        %v326 = vlaneseq
        %v327 = vshrl.u32 %v326, 7
        %v328 = vsub.s32 %v325, %v327
        %v329 = vrot.slane %v277, %v328
        %v330 = vadd.s32 %v325, 4294967288
        %v331 = vlaneseq
        %v332 = vshrl.u32 %v331, 7
        %v333 = vsub.s32 %v330, %v332
        %v334 = vrot.slane %v279, %v333
        %vm335 = vcmask 130112
        %v336 = vsel %vm335, %v334, %v329
        %v337 = vadd.s32 %v325, 4294967280
        %v338 = vlaneseq
        %v339 = vshrl.u32 %v338, 7
        %v340 = vsub.s32 %v337, %v339
        %v341 = vrot.slane %v281, %v340
        %vm342 = vcmask 195712
        %v343 = vsel %vm342, %v341, %v336
        %v344 = vadd.s32 %v325, 4294967272
        %v345 = vlaneseq
        %v346 = vshrl.u32 %v345, 7
        %v347 = vsub.s32 %v344, %v346
        %v348 = vrot.slane %v283, %v347
        %vm349 = vcmask 261312
        %v350 = vsel %vm349, %v348, %v343
        %v351 = vadd.s32 %v325, 4294967264
        %v352 = vlaneseq
        %v353 = vshrl.u32 %v352, 7
        %v354 = vsub.s32 %v351, %v353
        %v355 = vrot.slane %v285, %v354
        %vm356 = vcmask 326912
        %v357 = vsel %vm356, %v355, %v350
        %v358 = vadd.s32 %v325, 4294967256
        %v359 = vlaneseq
        %v360 = vshrl.u32 %v359, 7
        %v361 = vsub.s32 %v358, %v360
        %v362 = vrot.slane %v287, %v361
        %vm363 = vcmask 392512
        %v364 = vsel %vm363, %v362, %v357
        %v365 = vadd.s32 %v325, 4294967248
        %v366 = vlaneseq
        %v367 = vshrl.u32 %v366, 7
        %v368 = vsub.s32 %v365, %v367
        %v369 = vrot.slane %v289, %v368
        %vm370 = vcmask 458112
        %v371 = vsel %vm370, %v369, %v364
        %v372 = vadd.s32 %v325, 4294967240
        %v373 = vlaneseq
        %v374 = vshrl.u32 %v373, 7
        %v375 = vsub.s32 %v372, %v374
        %v376 = vrot.slane %v291, %v375
        %vm377 = vcmask 523712
        %v378 = vsel %vm377, %v376, %v371
        %v379 = vlaneseq
        %v380 = vshrl.u32 %v379, 7
        %v381 = vsub.s32 %v325, %v380
        %v382 = vrot.slane %v293, %v381
        %v383 = vlaneseq
        %v384 = vshrl.u32 %v383, 7
        %v385 = vsub.s32 %v330, %v384
        %v386 = vrot.slane %v295, %v385
        %v387 = vsel %vm335, %v386, %v382
        %v388 = vlaneseq
        %v389 = vshrl.u32 %v388, 7
        %v390 = vsub.s32 %v337, %v389
        %v391 = vrot.slane %v297, %v390
        %v392 = vsel %vm342, %v391, %v387
        %v393 = vlaneseq
        %v394 = vshrl.u32 %v393, 7
        %v395 = vsub.s32 %v344, %v394
        %v396 = vrot.slane %v299, %v395
        %v397 = vsel %vm349, %v396, %v392
        %v398 = vlaneseq
        %v399 = vshrl.u32 %v398, 7
        %v400 = vsub.s32 %v351, %v399
        %v401 = vrot.slane %v301, %v400
        %v402 = vsel %vm356, %v401, %v397
        %v403 = vlaneseq
        %v404 = vshrl.u32 %v403, 7
        %v405 = vsub.s32 %v358, %v404
        %v406 = vrot.slane %v303, %v405
        %v407 = vsel %vm363, %v406, %v402
        %v408 = vlaneseq
        %v409 = vshrl.u32 %v408, 7
        %v410 = vsub.s32 %v365, %v409
        %v411 = vrot.slane %v305, %v410
        %v412 = vsel %vm370, %v411, %v407
        %v413 = vlaneseq
        %v414 = vshrl.u32 %v413, 7
        %v415 = vsub.s32 %v372, %v414
        %v416 = vrot.slane %v307, %v415
        %v417 = vsel %vm377, %v416, %v412
        %vm418 = vcmask 1041409
        %v419 = vsel %vm418, %v417, %v378
        %v421 = vadd.f32 %v259, %v419
        %vm422 = vcmask 517120
        %423 = vst.msk [vmem:[#allocation2] sm:$0x3] %vm422, %v421
        %p424 = scmp.eq.s32.totalorder %s25, 1
        // Predicated region
        $region49: #{tpu_custom_call.1} parent=39 // pred_check
          %p425 = pneg %p424
        $region50: #{tpu_custom_call.1} parent=39 // pred_check_branch
          %427 = sbr.rel (%p425) target = $region52
        $region51: #{tpu_custom_call.1} parent=39 // pred_region
          %v428 = vld [vmem:[#allocation2] sm:$0x3]
          %v429 = vmul.f32 %v428, 0.00390625
          %v430 = vld [vmem:[%s1] sm:$0xff]
          %v431 = vld [vmem:[%s1 + $0x8] sm:$0xff]
          %v432 = vld [vmem:[%s1 + $0x10] sm:$0xff]
          %v433 = vld [vmem:[%s1 + $0x18] sm:$0xff]
          %v434 = vld [vmem:[%s1 + $0x20] sm:$0xff]
          %v435 = vld [vmem:[%s1 + $0x28] sm:$0xff]
          %v436 = vld [vmem:[%s1 + $0x30] sm:$0xff]
          %v437 = vld [vmem:[%s1 + $0x38] sm:$0xff]
          %v438 = vld [vmem:[%s3] sm:$0xff]
          %v439 = vld [vmem:[%s3 + $0x8] sm:$0xff]
          %v440 = vld [vmem:[%s3 + $0x10] sm:$0xff]
          %v441 = vld [vmem:[%s3 + $0x18] sm:$0xff]
          %v442 = vld [vmem:[%s2] sm:$0x1]
          %v443 = vld [vmem:[%s4] sm:$0x1]
          %v445 = vlaneseq
          %v446 = vshrl.u32 %v445, 7
          %v447 = vsub.s32 0, %v446
          %v448 = vrot.slane %v442, %v447
          %vm450 = vcmask 523264
          %v452 = vsel %vm450, %v429, 0
          %454 = vmatprep.subr.mxu0 0.0
          %455 = vmatpush1.msra.mxu0 %v430
          %456 = vmatprep.subr.mxu0 0.0
          %457 = vmatpush1.msra.mxu0 %v431
          %458 = vmatprep.subr.mxu0 0.0
          %459 = vmatpush1.msra.mxu0 %v432
          %460 = vmatprep.subr.mxu0 0.0
          %461 = vmatpush1.msra.mxu0 %v433
          %462 = vmatprep.subr.mxu0 0.0
          %463 = vmatpush1.msra.mxu0 %v434
          %464 = vmatprep.subr.mxu0 0.0
          %465 = vmatpush1.msra.mxu0 %v435
          %466 = vmatprep.subr.mxu0 0.0
          %467 = vmatpush1.msra.mxu0 %v436
          %468 = vmatprep.subr.mxu0 0.0
          %469 = vmatpush1.msra.mxu0 %v437
          %470 = vmatprep.subr.mxu0 0.0
          %471 = vmatpush1.msra.mxu0 0.0
          %472 = vmatprep.subr.mxu0 0.0
          %473 = vmatpush1.msra.mxu0 0.0
          %474 = vmatprep.subr.mxu0 0.0
          %475 = vmatpush1.msra.mxu0 0.0
          %476 = vmatprep.subr.mxu0 0.0
          %477 = vmatpush1.msra.mxu0 0.0
          %478 = vmatprep.subr.mxu0 0.0
          %479 = vmatpush1.msra.mxu0 0.0
          %480 = vmatprep.subr.mxu0 0.0
          %481 = vmatpush1.msra.mxu0 0.0
          %482 = vmatprep.subr.mxu0 0.0
          %483 = vmatpush1.msra.mxu0 0.0
          %484 = vmatprep.subr.mxu0 0.0
          %485 = vmatpush1.msra.mxu0 0.0
          %486 = vmatprep.subr.mxu0 0.0
          %487 = vmatpush1.msra.mxu0 0.0
          %488 = vmatprep.subr.mxu0 0.0
          %489 = vmatpush1.msra.mxu0 0.0
          %490 = vmatprep.subr.mxu0 0.0
          %491 = vmatpush1.msra.mxu0 0.0
          %492 = vmatprep.subr.mxu0 0.0
          %493 = vmatpush1.msra.mxu0 0.0
          %494 = vmatprep.subr.mxu0 0.0
          %495 = vmatpush1.msra.mxu0 0.0
          %496 = vmatprep.subr.mxu0 0.0
          %497 = vmatpush1.msra.mxu0 0.0
          %498 = vmatprep.subr.mxu0 0.0
          %499 = vmatpush1.msra.mxu0 0.0
          %500 = vmatprep.subr.mxu0 0.0
          %501 = vmatpush1.msra.mxu0 0.0
          %502 = vmatprep.subr.mxu0 0.0
          %503 = vmatpush1.msra.mxu0 0.0
          %504 = vmatprep.subr.mxu0 0.0
          %505 = vmatpush1.msra.mxu0 0.0
          %506 = vmatprep.subr.mxu0 0.0
          %507 = vmatpush1.msra.mxu0 0.0
          %508 = vmatprep.subr.mxu0 0.0
          %509 = vmatpush1.msra.mxu0 0.0
          %510 = vmatprep.subr.mxu0 0.0
          %511 = vmatpush1.msra.mxu0 0.0
          %512 = vmatprep.subr.mxu0 0.0
          %513 = vmatpush1.msra.mxu0 0.0
          %514 = vmatprep.subr.mxu0 0.0
          %515 = vmatpush1.msra.mxu0 0.0
          %516 = vmatprep.subr.mxu0 0.0
          %517 = vmatpush1.msra.mxu0 0.0
          %518 = vmatprep.mubr.f32.mxu0 0.0
          %519 = vmatmul.mubr.f32.gmra.mrb[0].mxu0 %v452
          %v520 = vpop.f32.mrb[0].mxu0
          %v521 = vadd.f32 %v448, %v520
          %v522 = vpop.f32.mrb[0].mxu0
          %523 = vdwg.mxu0
          %v524 = vmax.f32 %v521, 0.0
          %v526 = vlaneseq
          %v527 = vshrl.u32 %v526, 7
          %v528 = vsub.s32 0, %v527
          %v529 = vrot.slane %v443, %v528
          %vm531 = vcmask 261120
          %v533 = vsel %vm531, %v524, 0
          %535 = vmatprep.subr.mxu0 0.0
          %536 = vmatpush1.msra.mxu0 %v438
          %537 = vmatprep.subr.mxu0 0.0
          %538 = vmatpush1.msra.mxu0 %v439
          %539 = vmatprep.subr.mxu0 0.0
          %540 = vmatpush1.msra.mxu0 %v440
          %541 = vmatprep.subr.mxu0 0.0
          %542 = vmatpush1.msra.mxu0 %v441
          %543 = vmatprep.subr.mxu0 0.0
          %544 = vmatpush1.msra.mxu0 0.0
          %545 = vmatprep.subr.mxu0 0.0
          %546 = vmatpush1.msra.mxu0 0.0
          %547 = vmatprep.subr.mxu0 0.0
          %548 = vmatpush1.msra.mxu0 0.0
          %549 = vmatprep.subr.mxu0 0.0
          %550 = vmatpush1.msra.mxu0 0.0
          %551 = vmatprep.subr.mxu0 0.0
          %552 = vmatpush1.msra.mxu0 0.0
          %553 = vmatprep.subr.mxu0 0.0
          %554 = vmatpush1.msra.mxu0 0.0
          %555 = vmatprep.subr.mxu0 0.0
          %556 = vmatpush1.msra.mxu0 0.0
          %557 = vmatprep.subr.mxu0 0.0
          %558 = vmatpush1.msra.mxu0 0.0
          %559 = vmatprep.subr.mxu0 0.0
          %560 = vmatpush1.msra.mxu0 0.0
          %561 = vmatprep.subr.mxu0 0.0
          %562 = vmatpush1.msra.mxu0 0.0
          %563 = vmatprep.subr.mxu0 0.0
          %564 = vmatpush1.msra.mxu0 0.0
          %565 = vmatprep.subr.mxu0 0.0
          %566 = vmatpush1.msra.mxu0 0.0
          %567 = vmatprep.subr.mxu0 0.0
          %568 = vmatpush1.msra.mxu0 0.0
          %569 = vmatprep.subr.mxu0 0.0
          %570 = vmatpush1.msra.mxu0 0.0
          %571 = vmatprep.subr.mxu0 0.0
          %572 = vmatpush1.msra.mxu0 0.0
          %573 = vmatprep.subr.mxu0 0.0
          %574 = vmatpush1.msra.mxu0 0.0
          %575 = vmatprep.subr.mxu0 0.0
          %576 = vmatpush1.msra.mxu0 0.0
          %577 = vmatprep.subr.mxu0 0.0
          %578 = vmatpush1.msra.mxu0 0.0
          %579 = vmatprep.subr.mxu0 0.0
          %580 = vmatpush1.msra.mxu0 0.0
          %581 = vmatprep.subr.mxu0 0.0
          %582 = vmatpush1.msra.mxu0 0.0
          %583 = vmatprep.subr.mxu0 0.0
          %584 = vmatpush1.msra.mxu0 0.0
          %585 = vmatprep.subr.mxu0 0.0
          %586 = vmatpush1.msra.mxu0 0.0
          %587 = vmatprep.subr.mxu0 0.0
          %588 = vmatpush1.msra.mxu0 0.0
          %589 = vmatprep.subr.mxu0 0.0
          %590 = vmatpush1.msra.mxu0 0.0
          %591 = vmatprep.subr.mxu0 0.0
          %592 = vmatpush1.msra.mxu0 0.0
          %593 = vmatprep.subr.mxu0 0.0
          %594 = vmatpush1.msra.mxu0 0.0
          %595 = vmatprep.subr.mxu0 0.0
          %596 = vmatpush1.msra.mxu0 0.0
          %597 = vmatprep.subr.mxu0 0.0
          %598 = vmatpush1.msra.mxu0 0.0
          %599 = vmatprep.mubr.f32.mxu0 0.0
          %600 = vmatmul.mubr.f32.gmra.mrb[0].mxu0 %v533
          %v601 = vpop.f32.mrb[0].mxu0
          %v602 = vadd.f32 %v529, %v601
          %v603 = vpop.f32.mrb[0].mxu0
          %604 = vdwg.mxu0
          %vm605 = vcmask 74752
          %606 = vst.msk [vmem:[#allocation6] sm:$0x3] %vm605, %v602
        $region52: #{tpu_custom_call.1} parent=39 // pred_fallthru
          _
        // Predicated region
        $region53: #{tpu_custom_call.1} parent=39 // pred_check
          %p607 = pneg %p162
        $region54: #{tpu_custom_call.1} parent=39 // pred_check_branch
          %609 = sbr.rel (%p607) target = $region56
        $region55: #{tpu_custom_call.1} parent=39 // pred_region
          %s611 = ssub.s32 32, 32
          %612 = vsyncadd [#allocation5], %s611
          %s613 = smul.addr %s24, 32
          %s614 = scalar_lea.hbm %s5, %s613
          %s616 = sshll.u32 [#allocation6], 4
          %s617 = int_to_ptr.vmem [resolvable:$true] %s616
          %619 = dma.vmem_to_hbm [thread:$0]  %s617, 32, %s614, [#allocation5]
        $region56: #{tpu_custom_call.1} parent=39 // pred_fallthru
          _
        // Predicated region
        $region57: #{tpu_custom_call.1} parent=39 // pred_check
          %p620 = pneg %p162
        $region58: #{tpu_custom_call.1} parent=39 // pred_check_branch
          %622 = sbr.rel (%p620) target = $region60
        $region59: #{tpu_custom_call.1} parent=39 // pred_region
          %623 = dma.done [#allocation5], 32
        $region60: #{tpu_custom_call.1} parent=39 // pred_fallthru
          _
      $region40: #{tpu_custom_call.1} parent=5 // pred_fallthru
        _
      %p624 = scmp.le.s32.totalorder 2, %s15
      // Predicated region
      $region61: #{tpu_custom_call.1} parent=5 // pred_check
        %p625 = pneg %p624
      $region62: #{tpu_custom_call.1} parent=5 // pred_check_branch
        %627 = sbr.rel (%p625) target = $region64
      $region63: #{tpu_custom_call.1} parent=5 // pred_region
        %s628 = ssub.s32 %s15, 2
      $region64: #{tpu_custom_call.1} parent=5 // pred_fallthru
        _
    $region6: #{tpu_custom_call.1} parent=1 // loop_footer
      %s19 = sadd.s32 1, %s15
    $region7: #{tpu_custom_call.1} parent=1 // loop_footer_branch
      %14 = sbr.rel target = $region3
    $region8: #{tpu_custom_call.1} parent=1 // loop_exit
      _
    %629 = vsyncpa [#allocation4], 1
    %s630 = scalar_lea.sflag [#allocation4], 1
    %631 = vsyncpa %s630, 1
    %632 = vsyncpa [#allocation5], 1
    %s633 = scalar_lea.sflag [#allocation5], 1
    %634 = vsyncpa %s633, 1

</llo_original>
